<compile_context>
chip_gen: v5e
topology: v5e:2x2
jax: 0.10.0
libtpu: 0.0.40
codegen_flags: <defaults>
</compile_context>

<pallas_src>
import functools

import jax
import jax.numpy as jnp
from jax.experimental import pallas as pl
from jax.experimental.pallas import tpu as pltpu


def _elu(x):
    # F.elu with alpha=1; min() keeps exp() finite on the discarded branch.
    return jnp.where(x > 0, x, jnp.exp(jnp.minimum(x, 0.0)) - 1.0)


def _sigmoid(x):
    # exp() runs on the EUP; the reciprocal is kept exact (approx=True is a further
    # v5e/v6e option if ~1e-4 relative error is acceptable).
    return pl.reciprocal(1.0 + jnp.exp(-x), approx=False)


# -----------------------------------------------------------------------------
# Pallas kernel: per-batch-block STJA forward on lane-dense (nb, C, H*W) tiles.
#   p_ref (SMEM, f32[12]):
#     [0:9] conv_st11 3x3 weight (BN-folded, row-major), [9] its bias,
#     [10]  conv_st12 1x1 weight (BN-folded),            [11] its bias.
#   m_ref (VMEM, f32[4, H*W]): edge-validity masks (left / right / top / bottom).
# -----------------------------------------------------------------------------
def _stja2d_kernel(p_ref, m_ref, x_ref, o_ref, *, C, W, HW):
    # Channel mean, accumulated slice-by-slice so the whole x block never has to be
    # live in vregs (it stays resident in VMEM and is re-read at the end).
    xs = x_ref[:, 0, :].astype(jnp.float32)
    for c in range(1, C):
        xs = xs + x_ref[:, c, :].astype(jnp.float32)
    xs = xs * (1.0 / C)                                          # (nb, HW)

    mleft = m_ref[0:1, :] == 1.0     # col >= 1     : left-neighbour tap inside image
    mright = m_ref[1:2, :] == 1.0    # col <= W - 2 : right-neighbour tap inside image
    mtop = m_ref[2:3, :] == 1.0      # row >= 1     : upper-row taps inside image
    mbot = m_ref[3:4, :] == 1.0      # row <= H - 2 : lower-row taps inside image

    # Column (dj) shifts via XLU rolls; jnp.where (not multiply) so non-finite
    # wrapped values can never leak NaN into the zero-padded positions.
    t_l = jnp.where(mleft, pltpu.roll(xs, 1, axis=1), 0.0)        # xs[p - 1]
    t_c = xs
    t_r = jnp.where(mright, pltpu.roll(xs, HW - 1, axis=1), 0.0)  # xs[p + 1]

    # 3x3 conv (BN folded): combine the three dj taps per row offset di, then one
    # +-W roll + row mask per di.  4 rolls / 4 selects / 9 scalar mul-adds total.
    conv = jnp.zeros_like(xs)
    for ki, di in enumerate((-1, 0, 1)):
        s = (p_ref[3 * ki + 0] * t_l
             + p_ref[3 * ki + 1] * t_c
             + p_ref[3 * ki + 2] * t_r)
        if di == -1:
            s = jnp.where(mtop, pltpu.roll(s, W, axis=1), 0.0)        # s[p - W]
        elif di == 1:
            s = jnp.where(mbot, pltpu.roll(s, HW - W, axis=1), 0.0)   # s[p + W]
        conv = conv + s
    x_s_sig = _sigmoid(_elu(conv + p_ref[9]))                     # (nb, HW)

    # Temporal branch: global spatial mean -> 1x1 conv (+ folded BN) -> elu -> sigmoid.
    x_t = jnp.mean(xs, axis=-1, keepdims=True)                    # (nb, 1)
    x_t_sig = _sigmoid(_elu(x_t * p_ref[10] + p_ref[11]))

    x_st = x_s_sig * x_t_sig                                      # joint attention map

    # Broadcast over channels, re-reading each channel slice from VMEM.
    for c in range(C):
        o_ref[:, c, :] = (x_ref[:, c, :].astype(jnp.float32) * x_st).astype(o_ref.dtype)


# -----------------------------------------------------------------------------
# Host-side helpers & wrapper
# -----------------------------------------------------------------------------
def _num_tensorcores():
    try:
        d = jax.devices()[0]
        nc = getattr(d, "num_cores", None)
        if isinstance(nc, int) and nc >= 1:
            return int(nc)
        kind = str(getattr(d, "device_kind", "")).lower()
        if ("v7" in kind) or ("v5p" in kind) or ("v4" in kind):
            return 2
    except Exception:
        pass
    return 1


def _vmem_capacity_bytes():
    try:
        cap = int(getattr(pltpu.get_tpu_info(), "vmem_capacity_bytes", 0))
        if cap > 0:
            return cap
    except Exception:
        pass
    return 64 << 20  # conservative default: v7x per-TensorCore VMEM


def stja_2d_pallas(x, params):
    N, C, H, W = x.shape
    HW = H * W                      # ideally a multiple of 128 (lane-dense stores)
    itemsize = x.dtype.itemsize

    xf = x.reshape(N, C, HW)        # free reshape of contiguous NCHW

    # Precomputed edge masks: 1.0 where the shifted conv tap stays inside the image.
    idx = jnp.arange(HW, dtype=jnp.int32)
    col, row = idx % W, idx // W
    masks = jnp.stack(
        [col >= 1, col <= W - 2, row >= 1, row <= H - 2]
    ).astype(jnp.float32)           # (4, HW)

    # --- batch-block sizing ---------------------------------------------------
    vmem_cap = _vmem_capacity_bytes()
    cores = _num_tensorcores()
    # <= ~8 MiB of input per block => ~4x that (double-buffered in + out) stays well
    # inside v7x's 64 MiB/TC while amortising the ~0.35us per-step overhead.
    block_budget = min(8 << 20, max(1 << 20, vmem_cap // 8))
    per_batch_bytes = max(1, C * HW * itemsize)
    nb = max(1, min(N, block_budget // per_batch_bytes))
    if cores > 1 and N > 1:
        # multi-TC: give every core work (and, when N allows, >= 2 steps per core).
        nb = min(nb, max(1, N // min(N, 2 * cores)))
    elif N > 1:
        # single TC: just keep >= 2 grid steps for DMA/compute overlap.
        nb = min(nb, max(1, (N + 1) // 2))

    steps = -(-N // nb)
    if cores > 1:
        steps = -(-steps // cores) * cores   # grid length a multiple of #cores
    n_pad = steps * nb
    if n_pad != N:                           # pad a tail slab instead of shrinking nb
        xf = jnp.pad(xf, ((0, n_pad - N), (0, 0), (0, 0)))

    block_bytes = nb * C * HW * itemsize
    vmem_limit = 4 * block_bytes + masks.size * 4 + (8 << 20)     # 2x in + 2x out + headroom
    vmem_limit = int(min(max(vmem_limit, 32 << 20), int(vmem_cap * 0.9)))

    kernel = functools.partial(_stja2d_kernel, C=C, W=W, HW=HW)
    out = pl.pallas_call(
        kernel,
        out_shape=jax.ShapeDtypeStruct((n_pad, C, HW), x.dtype),
        grid=(steps,),
        in_specs=[
            pl.BlockSpec(memory_space=pltpu.MemorySpace.SMEM),    # folded conv/BN params
            pl.BlockSpec((4, HW), lambda n: (0, 0)),              # edge masks
            pl.BlockSpec((nb, C, HW), lambda n: (n, 0, 0)),       # x (lane-dense)
        ],
        out_specs=pl.BlockSpec((nb, C, HW), lambda n: (n, 0, 0)),
        compiler_params=pltpu.CompilerParams(
            dimension_semantics=("parallel",),
            vmem_limit_bytes=vmem_limit,
        ),
    )(params, masks, xf)
    return out[:N].reshape(N, C, H, W)


# -----------------------------------------------------------------------------
# Deterministic parameter initialization (BN folded) + pure-JAX reference.
# -----------------------------------------------------------------------------
def init_params(key):
    k1, k2 = jax.random.split(key, 2)
    w11 = jax.random.normal(k1, (3, 3), jnp.float32) * 0.3    # conv_st11 weight
    b11 = 0.1                                                  # conv_st11 bias
    g1, be1, rm1, rv1 = 0.9, 0.05, 0.02, 1.1                   # bn_st11 (eval)
    w12 = jax.random.normal(k2, (), jnp.float32) * 0.5         # conv_st12 weight
    b12 = -0.1                                                 # conv_st12 bias
    g2, be2, rm2, rv2 = 1.1, -0.05, 0.01, 0.8                  # bn_st12 (eval)
    eps = 1e-5
    s1 = g1 / (rv1 + eps) ** 0.5
    sh1 = be1 - rm1 * s1
    s2 = g2 / (rv2 + eps) ** 0.5
    sh2 = be2 - rm2 * s2
    # Fold BN into conv: bn(conv_w(x) + b) == conv_{w*s}(x) + (b*s + sh)
    return jnp.concatenate([
        (w11 * s1).reshape(-1),
        jnp.array([b11 * s1 + sh1], jnp.float32),
        (w12 * s2).reshape(1),
        jnp.array([b12 * s2 + sh2], jnp.float32),
    ]).astype(jnp.float32)


def stja_2d_ref(x, params):
    N, C, H, W = x.shape
    xf = x.astype(jnp.float32)
    w11 = params[:9].reshape(3, 3)
    b11, w12, b12 = params[9], params[10], params[11]
    x_s = jnp.mean(xf, axis=1, keepdims=True)                      # (N,1,H,W)
    xsp = jnp.pad(x_s, ((0, 0), (0, 0), (1, 1), (1, 1)))
    acc = jnp.zeros((N, 1, H, W), jnp.float32)
    for ki in range(3):
        for kj in range(3):
            acc = acc + w11[ki, kj] * xsp[:, :, ki:ki + H, kj:kj + W]
    x_s_sig = jax.nn.sigmoid(_elu(acc + b11))
    x_t = jnp.mean(x_s, axis=(2, 3), keepdims=True)                # (N,1,1,1)
    x_t_sig = jax.nn.sigmoid(_elu(x_t * w12 + b12))
    return (xf * (x_s_sig * x_t_sig)).astype(x.dtype)


if __name__ == "__main__":
    key = jax.random.PRNGKey(0)
    kx, kp = jax.random.split(key)
    N, C, H, W = 2, 4, 16, 16
    x = jax.random.normal(kx, (N, C, H, W), jnp.float32)
    params = init_params(kp)

    out = jax.block_until_ready(stja_2d_pallas(x, params))
    ref = stja_2d_ref(x, params)

    assert out.shape == (N, C, H, W), out.shape
    max_err = float(jnp.max(jnp.abs(out - ref)))
    assert jnp.allclose(out, ref, atol=2e-5, rtol=2e-5), max_err
    print("KERNEL_OK")
</pallas_src>

<mosaic_0001>
module attributes {stable_mosaic.version = 11 : i64} {
  func.func @_stja2d_kernel(%arg0: i32, %arg1: memref<12xf32, #tpu.memory_space<smem>>, %arg2: memref<4x256xf32, #tpu.memory_space<vmem>>, %arg3: memref<1x4x256xf32, #tpu.memory_space<vmem>>, %arg4: memref<1x4x256xf32, #tpu.memory_space<vmem>>) attributes {dimension_semantics = [#tpu.dimension_semantics<parallel>], iteration_bounds = array<i64: 2>, scalar_prefetch = 0 : i64, scratch_operands = 0 : i64, tpu.core_type = #tpu.core_type<tc>, window_params = [{transform_indices = @transform_0, window_bounds = array<i64: 12>}, {pipeline_mode = #tpu.pipeline_mode<synchronous>, transform_indices = @transform_1, window_bounds = array<i64: 4, 256>}, {transform_indices = @transform_2, window_bounds = array<i64: 1, 4, 256>}, {transform_indices = @transform_3, window_bounds = array<i64: 1, 4, 256>}]} {
    %c0 = arith.constant 0 : index
    %c0_0 = arith.constant 0 : index
    %c0_1 = arith.constant 0 : index
    %0 = vector.load %arg3[%c0, %c0_0, %c0_1] : memref<1x4x256xf32, #tpu.memory_space<vmem>>, vector<1x1x256xf32>
    %1 = vector.shape_cast %0 : vector<1x1x256xf32> to vector<1x256xf32>
    %c0_2 = arith.constant 0 : index
    %c1 = arith.constant 1 : index
    %c0_3 = arith.constant 0 : index
    %2 = vector.load %arg3[%c0_2, %c1, %c0_3] : memref<1x4x256xf32, #tpu.memory_space<vmem>>, vector<1x1x256xf32>
    %3 = vector.shape_cast %2 : vector<1x1x256xf32> to vector<1x256xf32>
    %4 = arith.addf %1, %3 : vector<1x256xf32>
    %c0_4 = arith.constant 0 : index
    %c2 = arith.constant 2 : index
    %c0_5 = arith.constant 0 : index
    %5 = vector.load %arg3[%c0_4, %c2, %c0_5] : memref<1x4x256xf32, #tpu.memory_space<vmem>>, vector<1x1x256xf32>
    %6 = vector.shape_cast %5 : vector<1x1x256xf32> to vector<1x256xf32>
    %7 = arith.addf %4, %6 : vector<1x256xf32>
    %c0_6 = arith.constant 0 : index
    %c3 = arith.constant 3 : index
    %c0_7 = arith.constant 0 : index
    %8 = vector.load %arg3[%c0_6, %c3, %c0_7] : memref<1x4x256xf32, #tpu.memory_space<vmem>>, vector<1x1x256xf32>
    %9 = vector.shape_cast %8 : vector<1x1x256xf32> to vector<1x256xf32>
    %10 = arith.addf %7, %9 : vector<1x256xf32>
    %cst = arith.constant 2.500000e-01 : f32
    %11 = vector.broadcast %cst : f32 to vector<1x256xf32>
    %12 = arith.mulf %10, %11 : vector<1x256xf32>
    %c0_8 = arith.constant 0 : index
    %c0_9 = arith.constant 0 : index
    %13 = vector.load %arg2[%c0_8, %c0_9] : memref<4x256xf32, #tpu.memory_space<vmem>>, vector<1x256xf32>
    %cst_10 = arith.constant 1.000000e+00 : f32
    %14 = vector.broadcast %cst_10 : f32 to vector<1x256xf32>
    %15 = arith.cmpf oeq, %13, %14 : vector<1x256xf32>
    %c1_11 = arith.constant 1 : index
    %c0_12 = arith.constant 0 : index
    %16 = vector.load %arg2[%c1_11, %c0_12] : memref<4x256xf32, #tpu.memory_space<vmem>>, vector<1x256xf32>
    %cst_13 = arith.constant 1.000000e+00 : f32
    %17 = vector.broadcast %cst_13 : f32 to vector<1x256xf32>
    %18 = arith.cmpf oeq, %16, %17 : vector<1x256xf32>
    %c2_14 = arith.constant 2 : index
    %c0_15 = arith.constant 0 : index
    %19 = vector.load %arg2[%c2_14, %c0_15] : memref<4x256xf32, #tpu.memory_space<vmem>>, vector<1x256xf32>
    %cst_16 = arith.constant 1.000000e+00 : f32
    %20 = vector.broadcast %cst_16 : f32 to vector<1x256xf32>
    %21 = arith.cmpf oeq, %19, %20 : vector<1x256xf32>
    %c3_17 = arith.constant 3 : index
    %c0_18 = arith.constant 0 : index
    %22 = vector.load %arg2[%c3_17, %c0_18] : memref<4x256xf32, #tpu.memory_space<vmem>>, vector<1x256xf32>
    %cst_19 = arith.constant 1.000000e+00 : f32
    %23 = vector.broadcast %cst_19 : f32 to vector<1x256xf32>
    %24 = arith.cmpf oeq, %22, %23 : vector<1x256xf32>
    %c1_i32 = arith.constant 1 : i32
    %25 = tpu.dynamic_rotate %12 by %c1_i32 dim 1 : vector<1x256xf32>, i32 -> vector<1x256xf32>
    %cst_20 = arith.constant 0.000000e+00 : f32
    %26 = vector.broadcast %cst_20 : f32 to vector<1x256xf32>
    %27 = arith.select %15, %25, %26 : vector<1x256xi1>, vector<1x256xf32>
    %c255_i32 = arith.constant 255 : i32
    %28 = tpu.dynamic_rotate %12 by %c255_i32 dim 1 : vector<1x256xf32>, i32 -> vector<1x256xf32>
    %cst_21 = arith.constant 0.000000e+00 : f32
    %29 = vector.broadcast %cst_21 : f32 to vector<1x256xf32>
    %30 = arith.select %18, %28, %29 : vector<1x256xi1>, vector<1x256xf32>
    %cst_22 = arith.constant 0.000000e+00 : f32
    %31 = vector.broadcast %cst_22 : f32 to vector<1x256xf32>
    %c0_23 = arith.constant 0 : index
    %32 = memref.load %arg1[%c0_23] : memref<12xf32, #tpu.memory_space<smem>>
    %33 = vector.broadcast %32 : f32 to vector<1x256xf32>
    %34 = arith.mulf %33, %27 : vector<1x256xf32>
    %c1_24 = arith.constant 1 : index
    %35 = memref.load %arg1[%c1_24] : memref<12xf32, #tpu.memory_space<smem>>
    %36 = vector.broadcast %35 : f32 to vector<1x256xf32>
    %37 = arith.mulf %36, %12 : vector<1x256xf32>
    %38 = arith.addf %34, %37 : vector<1x256xf32>
    %c2_25 = arith.constant 2 : index
    %39 = memref.load %arg1[%c2_25] : memref<12xf32, #tpu.memory_space<smem>>
    %40 = vector.broadcast %39 : f32 to vector<1x256xf32>
    %41 = arith.mulf %40, %30 : vector<1x256xf32>
    %42 = arith.addf %38, %41 : vector<1x256xf32>
    %c16_i32 = arith.constant 16 : i32
    %43 = tpu.dynamic_rotate %42 by %c16_i32 dim 1 : vector<1x256xf32>, i32 -> vector<1x256xf32>
    %cst_26 = arith.constant 0.000000e+00 : f32
    %44 = vector.broadcast %cst_26 : f32 to vector<1x256xf32>
    %45 = arith.select %21, %43, %44 : vector<1x256xi1>, vector<1x256xf32>
    %46 = arith.addf %31, %45 : vector<1x256xf32>
    %c3_27 = arith.constant 3 : index
    %47 = memref.load %arg1[%c3_27] : memref<12xf32, #tpu.memory_space<smem>>
    %48 = vector.broadcast %47 : f32 to vector<1x256xf32>
    %49 = arith.mulf %48, %27 : vector<1x256xf32>
    %c4 = arith.constant 4 : index
    %50 = memref.load %arg1[%c4] : memref<12xf32, #tpu.memory_space<smem>>
    %51 = vector.broadcast %50 : f32 to vector<1x256xf32>
    %52 = arith.mulf %51, %12 : vector<1x256xf32>
    %53 = arith.addf %49, %52 : vector<1x256xf32>
    %c5 = arith.constant 5 : index
    %54 = memref.load %arg1[%c5] : memref<12xf32, #tpu.memory_space<smem>>
    %55 = vector.broadcast %54 : f32 to vector<1x256xf32>
    %56 = arith.mulf %55, %30 : vector<1x256xf32>
    %57 = arith.addf %53, %56 : vector<1x256xf32>
    %58 = arith.addf %46, %57 : vector<1x256xf32>
    %c6 = arith.constant 6 : index
    %59 = memref.load %arg1[%c6] : memref<12xf32, #tpu.memory_space<smem>>
    %60 = vector.broadcast %59 : f32 to vector<1x256xf32>
    %61 = arith.mulf %60, %27 : vector<1x256xf32>
    %c7 = arith.constant 7 : index
    %62 = memref.load %arg1[%c7] : memref<12xf32, #tpu.memory_space<smem>>
    %63 = vector.broadcast %62 : f32 to vector<1x256xf32>
    %64 = arith.mulf %63, %12 : vector<1x256xf32>
    %65 = arith.addf %61, %64 : vector<1x256xf32>
    %c8 = arith.constant 8 : index
    %66 = memref.load %arg1[%c8] : memref<12xf32, #tpu.memory_space<smem>>
    %67 = vector.broadcast %66 : f32 to vector<1x256xf32>
    %68 = arith.mulf %67, %30 : vector<1x256xf32>
    %69 = arith.addf %65, %68 : vector<1x256xf32>
    %c240_i32 = arith.constant 240 : i32
    %70 = tpu.dynamic_rotate %69 by %c240_i32 dim 1 : vector<1x256xf32>, i32 -> vector<1x256xf32>
    %cst_28 = arith.constant 0.000000e+00 : f32
    %71 = vector.broadcast %cst_28 : f32 to vector<1x256xf32>
    %72 = arith.select %24, %70, %71 : vector<1x256xi1>, vector<1x256xf32>
    %73 = arith.addf %58, %72 : vector<1x256xf32>
    %c9 = arith.constant 9 : index
    %74 = memref.load %arg1[%c9] : memref<12xf32, #tpu.memory_space<smem>>
    %75 = vector.broadcast %74 : f32 to vector<1x256xf32>
    %76 = arith.addf %73, %75 : vector<1x256xf32>
    %cst_29 = arith.constant 0.000000e+00 : f32
    %77 = vector.broadcast %cst_29 : f32 to vector<1x256xf32>
    %78 = arith.cmpf ogt, %76, %77 : vector<1x256xf32>
    %cst_30 = arith.constant 0.000000e+00 : f32
    %79 = vector.broadcast %cst_30 : f32 to vector<1x256xf32>
    %80 = arith.minimumf %76, %79 : vector<1x256xf32>
    %81 = math.exp %80 : vector<1x256xf32>
    %cst_31 = arith.constant 1.000000e+00 : f32
    %82 = vector.broadcast %cst_31 : f32 to vector<1x256xf32>
    %83 = arith.subf %81, %82 : vector<1x256xf32>
    %84 = arith.select %78, %76, %83 : vector<1x256xi1>, vector<1x256xf32>
    %cst_32 = arith.constant 0.000000e+00 : f32
    %85 = vector.broadcast %cst_32 : f32 to vector<1x256xf32>
    %86 = arith.subf %85, %84 : vector<1x256xf32>
    %87 = math.exp %86 : vector<1x256xf32>
    %cst_33 = arith.constant 1.000000e+00 : f32
    %88 = vector.broadcast %cst_33 : f32 to vector<1x256xf32>
    %89 = arith.addf %88, %87 : vector<1x256xf32>
    %90 = tpu.reciprocal %89 : vector<1x256xf32> -> vector<1x256xf32>
    %cst_34 = arith.constant dense<0.000000e+00> : vector<1xf32>
    %91 = vector.multi_reduction <add>, %12, %cst_34 [1] : vector<1x256xf32> to vector<1xf32>
    %92 = vector.shape_cast %91 : vector<1xf32> to vector<1x1xf32>
    %cst_35 = arith.constant 2.560000e+02 : f32
    %93 = vector.broadcast %cst_35 : f32 to vector<1x1xf32>
    %94 = arith.divf %92, %93 : vector<1x1xf32>
    %c10 = arith.constant 10 : index
    %95 = memref.load %arg1[%c10] : memref<12xf32, #tpu.memory_space<smem>>
    %96 = vector.broadcast %95 : f32 to vector<1x1xf32>
    %97 = arith.mulf %94, %96 : vector<1x1xf32>
    %c11 = arith.constant 11 : index
    %98 = memref.load %arg1[%c11] : memref<12xf32, #tpu.memory_space<smem>>
    %99 = vector.broadcast %98 : f32 to vector<1x1xf32>
    %100 = arith.addf %97, %99 : vector<1x1xf32>
    %cst_36 = arith.constant 0.000000e+00 : f32
    %101 = vector.broadcast %cst_36 : f32 to vector<1x1xf32>
    %102 = arith.cmpf ogt, %100, %101 : vector<1x1xf32>
    %cst_37 = arith.constant 0.000000e+00 : f32
    %103 = vector.broadcast %cst_37 : f32 to vector<1x1xf32>
    %104 = arith.minimumf %100, %103 : vector<1x1xf32>
    %105 = math.exp %104 : vector<1x1xf32>
    %cst_38 = arith.constant 1.000000e+00 : f32
    %106 = vector.broadcast %cst_38 : f32 to vector<1x1xf32>
    %107 = arith.subf %105, %106 : vector<1x1xf32>
    %108 = arith.select %102, %100, %107 : vector<1x1xi1>, vector<1x1xf32>
    %cst_39 = arith.constant 0.000000e+00 : f32
    %109 = vector.broadcast %cst_39 : f32 to vector<1x1xf32>
    %110 = arith.subf %109, %108 : vector<1x1xf32>
    %111 = math.exp %110 : vector<1x1xf32>
    %cst_40 = arith.constant 1.000000e+00 : f32
    %112 = vector.broadcast %cst_40 : f32 to vector<1x1xf32>
    %113 = arith.addf %112, %111 : vector<1x1xf32>
    %114 = tpu.reciprocal %113 : vector<1x1xf32> -> vector<1x1xf32>
    %115 = vector.broadcast %114 : vector<1x1xf32> to vector<1x256xf32>
    %116 = arith.mulf %90, %115 : vector<1x256xf32>
    %c0_41 = arith.constant 0 : index
    %c0_42 = arith.constant 0 : index
    %c0_43 = arith.constant 0 : index
    %117 = vector.load %arg3[%c0_41, %c0_42, %c0_43] : memref<1x4x256xf32, #tpu.memory_space<vmem>>, vector<1x1x256xf32>
    %118 = vector.shape_cast %117 : vector<1x1x256xf32> to vector<1x256xf32>
    %119 = arith.mulf %118, %116 : vector<1x256xf32>
    %c0_44 = arith.constant 0 : index
    %c0_45 = arith.constant 0 : index
    %c0_46 = arith.constant 0 : index
    %120 = vector.load %arg4[%c0_44, %c0_45, %c0_46] : memref<1x4x256xf32, #tpu.memory_space<vmem>>, vector<1x1x256xf32>
    %121 = vector.shape_cast %120 : vector<1x1x256xf32> to vector<1x256xf32>
    %122 = vector.shape_cast %119 : vector<1x256xf32> to vector<1x1x256xf32>
    tpu.vector_store %arg4[%c0_44, %c0_45, %c0_46], %122 {strides = array<i32>} : memref<1x4x256xf32, #tpu.memory_space<vmem>>, vector<1x1x256xf32>,
    %c0_47 = arith.constant 0 : index
    %c1_48 = arith.constant 1 : index
    %c0_49 = arith.constant 0 : index
    %123 = vector.load %arg3[%c0_47, %c1_48, %c0_49] : memref<1x4x256xf32, #tpu.memory_space<vmem>>, vector<1x1x256xf32>
    %124 = vector.shape_cast %123 : vector<1x1x256xf32> to vector<1x256xf32>
    %125 = arith.mulf %124, %116 : vector<1x256xf32>
    %c0_50 = arith.constant 0 : index
    %c1_51 = arith.constant 1 : index
    %c0_52 = arith.constant 0 : index
    %126 = vector.load %arg4[%c0_50, %c1_51, %c0_52] : memref<1x4x256xf32, #tpu.memory_space<vmem>>, vector<1x1x256xf32>
    %127 = vector.shape_cast %126 : vector<1x1x256xf32> to vector<1x256xf32>
    %128 = vector.shape_cast %125 : vector<1x256xf32> to vector<1x1x256xf32>
    tpu.vector_store %arg4[%c0_50, %c1_51, %c0_52], %128 {strides = array<i32>} : memref<1x4x256xf32, #tpu.memory_space<vmem>>, vector<1x1x256xf32>,
    %c0_53 = arith.constant 0 : index
    %c2_54 = arith.constant 2 : index
    %c0_55 = arith.constant 0 : index
    %129 = vector.load %arg3[%c0_53, %c2_54, %c0_55] : memref<1x4x256xf32, #tpu.memory_space<vmem>>, vector<1x1x256xf32>
    %130 = vector.shape_cast %129 : vector<1x1x256xf32> to vector<1x256xf32>
    %131 = arith.mulf %130, %116 : vector<1x256xf32>
    %c0_56 = arith.constant 0 : index
    %c2_57 = arith.constant 2 : index
    %c0_58 = arith.constant 0 : index
    %132 = vector.load %arg4[%c0_56, %c2_57, %c0_58] : memref<1x4x256xf32, #tpu.memory_space<vmem>>, vector<1x1x256xf32>
    %133 = vector.shape_cast %132 : vector<1x1x256xf32> to vector<1x256xf32>
    %134 = vector.shape_cast %131 : vector<1x256xf32> to vector<1x1x256xf32>
    tpu.vector_store %arg4[%c0_56, %c2_57, %c0_58], %134 {strides = array<i32>} : memref<1x4x256xf32, #tpu.memory_space<vmem>>, vector<1x1x256xf32>,
    %c0_59 = arith.constant 0 : index
    %c3_60 = arith.constant 3 : index
    %c0_61 = arith.constant 0 : index
    %135 = vector.load %arg3[%c0_59, %c3_60, %c0_61] : memref<1x4x256xf32, #tpu.memory_space<vmem>>, vector<1x1x256xf32>
    %136 = vector.shape_cast %135 : vector<1x1x256xf32> to vector<1x256xf32>
    %137 = arith.mulf %136, %116 : vector<1x256xf32>
    %c0_62 = arith.constant 0 : index
    %c3_63 = arith.constant 3 : index
    %c0_64 = arith.constant 0 : index
    %138 = vector.load %arg4[%c0_62, %c3_63, %c0_64] : memref<1x4x256xf32, #tpu.memory_space<vmem>>, vector<1x1x256xf32>
    %139 = vector.shape_cast %138 : vector<1x1x256xf32> to vector<1x256xf32>
    %140 = vector.shape_cast %137 : vector<1x256xf32> to vector<1x1x256xf32>
    tpu.vector_store %arg4[%c0_62, %c3_63, %c0_64], %140 {strides = array<i32>} : memref<1x4x256xf32, #tpu.memory_space<vmem>>, vector<1x1x256xf32>,
    return
  }
  func.func @transform_0(%arg0: i32) -> i32 {
    %c0_i32 = arith.constant 0 : i32
    %c0_i32_0 = arith.constant 0 : i32
    return %c0_i32 : i32
  }
  func.func @transform_1(%arg0: i32) -> (i32, i32) {
    %c0_i32 = arith.constant 0 : i32
    %c0_i32_0 = arith.constant 0 : i32
    %c0_i32_1 = arith.constant 0 : i32
    return %c0_i32, %c0_i32_0 : i32, i32
  }
  func.func @transform_2(%arg0: i32) -> (i32, i32, i32) {
    %c0_i32 = arith.constant 0 : i32
    %c0_i32_0 = arith.constant 0 : i32
    %c0_i32_1 = arith.constant 0 : i32
    return %arg0, %c0_i32, %c0_i32_0 : i32, i32, i32
  }
  func.func @transform_3(%arg0: i32) -> (i32, i32, i32) {
    %c0_i32 = arith.constant 0 : i32
    %c0_i32_0 = arith.constant 0 : i32
    %c0_i32_1 = arith.constant 0 : i32
    return %arg0, %c0_i32, %c0_i32_0 : i32, i32, i32
  }
}

</mosaic_0001>

<llo_original>
// kernel: tpu_custom_call.1
$region0: #{tpu_custom_call.1}
  #allocation0 [shape = 'u32[]', space=smem, size = 0x4, offset = 0x4, fixed_abs, tag = 'smem constant byte address 0x4 - core index']
  #allocation1 [shape = 'u32[72,128]{1,0:T(1,128)}', space=vmem, size = 0x9000, scoped, tag = 'internal scratch']
  %s0 = inlined_call_operand.hbm [shape: f32[12], index: 0, kind: input, shape index: {}]
  %s1 = inlined_call_operand.hbm [shape: f32[4,256], index: 1, kind: input, shape index: {}]
  %s2 = inlined_call_operand.hbm [shape: f32[2,4,256], index: 2, kind: input, shape index: {}]
  %s3 = inlined_call_operand.hbm [shape: f32[2,4,256], index: 3, kind: output, shape index: {}]
  %s4 = sld [smem:[#allocation0]]
  $region57: #{tpu_custom_call.1} parent=0
    _
  %s6 = ssub.s32 1, %s4
  %s7 = scalar_select 0, %s6, %s4
  $region1: #{tpu_custom_call.1} parent=0
    #allocation2 [shape = 'u8[512]{0}', space=smem, size = 0x200, scoped, tag = 'input window, operand 0, single buffered']
    #allocation3 [shape = 's32[2]{0}', space=sflag, size = 0x8, scoped, tag = 'scoped memory for tpu_custom_call.1']
    #allocation4 [shape = 's32[2]{0}', space=sflag, size = 0x8, scoped, tag = 'scoped memory for tpu_custom_call.1']
    #allocation5 [shape = 's32[2]{0}', space=sflag, size = 0x8, scoped, tag = 'scoped memory for tpu_custom_call.1']
    #allocation6 [shape = 'u8[4096]{0}', space=vmem, size = 0x1000, scoped, tag = 'input window, operand 1, single buffered']
    #allocation7 [shape = 'u8[8192]{0}', space=vmem, size = 0x2000, scoped, tag = 'input window, operand 2']
    #allocation8 [shape = 's32[2]{0}', space=sflag, size = 0x8, scoped, tag = 'scoped memory for tpu_custom_call.1']
    #allocation9 [shape = 'u8[8192]{0}', space=vmem, size = 0x2000, scoped, tag = 'output window, operand 0']
    %8 = vsyncpa [#allocation5], 0
    %9 = vsyncpa [#allocation3], 0
    %10 = vsyncpa [#allocation8], 0
    %s11 = scalar_lea.sflag [#allocation8], 1
    %12 = vsyncpa %s11, 0
    %13 = vsyncpa [#allocation4], 0
    %s14 = scalar_lea.sflag [#allocation4], 1
    %15 = vsyncpa %s14, 0
    loop: start=0, step=1, limit=4
    $region2: #{tpu_custom_call.1} parent=1 // loop_pre_header
      _
    $region3: #{tpu_custom_call.1} parent=1 // loop_header
      %s17 = sphi 0, %s21
      %p18 = scmp.ge.s32.totalorder %s17, 4
      %s25 = sphi 0, %s25
      %s27 = sphi 0, %s25
      %s28 = sphi 0, %s27
      %s42 = sphi 0, %s28
      %s46 = sphi 0, %s46
      %s48 = sphi 0, %s46
      %s49 = sphi 0, %s48
      %s63 = sphi 0, %s49
      %s69 = sphi 0, %s71
      %s72 = sphi 0, %s69
      %s73 = sphi 0, %s72
      %s89 = sphi 0, %s73
      %s95 = sphi 0, %s97
      %s98 = sphi 0, %s95
      %s99 = sphi 0, %s98
      %s115 = sphi 0, %s99
    $region4: #{tpu_custom_call.1} parent=1 // loop_header_branch
      %20 = sbr.rel (%p18) target = $region8
    $region5: #{tpu_custom_call.1} parent=1 // loop_body
      %s22 = ssub.s32 %s17, 1
      %s23 = ssub.s32 %s17, 2
      %s24 = sadd.s32 %s17, 1
      %s26 = sadd.s32 %s25, 1
      %p29 = scmp.eq.s32.totalorder %s17, 1
      %p30 = scmp.ne.s32.totalorder %s25, %s27
      %p31 = scmp.eq.s32.totalorder %s17, 0
      %p32 = por %p30, %p31
      %p33 = scmp.ne.s32.totalorder %s25, %s27
      %p34 = scmp.eq.s32.totalorder %s22, 1
      %p35 = por %p33, %p34
      %p36 = scmp.ne.s32.totalorder %s27, %s28
      %p37 = scmp.eq.s32.totalorder %s22, 0
      %p38 = por %p36, %p37
      %p39 = scmp.ne.s32.totalorder %s27, %s28
      %p40 = scmp.eq.s32.totalorder %s23, 1
      %p41 = por %p39, %p40
      %p43 = scmp.ne.s32.totalorder %s28, %s42
      %p44 = scmp.eq.s32.totalorder %s23, 0
      %p45 = por %p43, %p44
      %s47 = sadd.s32 %s46, 1
      %p50 = scmp.eq.s32.totalorder %s17, 1
      %p51 = scmp.ne.s32.totalorder %s46, %s48
      %p52 = scmp.eq.s32.totalorder %s17, 0
      %p53 = por %p51, %p52
      %p54 = scmp.ne.s32.totalorder %s46, %s48
      %p55 = scmp.eq.s32.totalorder %s22, 1
      %p56 = por %p54, %p55
      %p57 = scmp.ne.s32.totalorder %s48, %s49
      %p58 = scmp.eq.s32.totalorder %s22, 0
      %p59 = por %p57, %p58
      %p60 = scmp.ne.s32.totalorder %s48, %s49
      %p61 = scmp.eq.s32.totalorder %s23, 1
      %p62 = por %p60, %p61
      %p64 = scmp.ne.s32.totalorder %s49, %s63
      %p65 = scmp.eq.s32.totalorder %s23, 0
      %p66 = por %p64, %p65
      %s67 = ssub.s32 %s17, %s24
      %p68 = scmp.eq.s32.totalorder %s67, 0
      %s70 = sadd.s32 %s69, 1
      %s71 = scalar_select %p68, %s69, %s70
      %p74 = pneg %p68
      %p75 = scmp.eq.s32.totalorder %s17, 1
      %p76 = por %p74, %p75
      %p77 = scmp.ne.s32.totalorder %s69, %s72
      %p78 = scmp.eq.s32.totalorder %s17, 0
      %p79 = por %p77, %p78
      %p80 = scmp.ne.s32.totalorder %s69, %s72
      %p81 = scmp.eq.s32.totalorder %s22, 1
      %p82 = por %p80, %p81
      %p83 = scmp.ne.s32.totalorder %s72, %s73
      %p84 = scmp.eq.s32.totalorder %s22, 0
      %p85 = por %p83, %p84
      %p86 = scmp.ne.s32.totalorder %s72, %s73
      %p87 = scmp.eq.s32.totalorder %s23, 1
      %p88 = por %p86, %p87
      %p90 = scmp.ne.s32.totalorder %s73, %s89
      %p91 = scmp.eq.s32.totalorder %s23, 0
      %p92 = por %p90, %p91
      %s93 = ssub.s32 %s17, %s24
      %p94 = scmp.eq.s32.totalorder %s93, 0
      %s96 = sadd.s32 %s95, 1
      %s97 = scalar_select %p94, %s95, %s96
      %p100 = pneg %p94
      %p101 = scmp.eq.s32.totalorder %s17, 1
      %p102 = por %p100, %p101
      %p103 = scmp.ne.s32.totalorder %s95, %s98
      %p104 = scmp.eq.s32.totalorder %s17, 0
      %p105 = por %p103, %p104
      %p106 = scmp.ne.s32.totalorder %s95, %s98
      %p107 = scmp.eq.s32.totalorder %s22, 1
      %p108 = por %p106, %p107
      %p109 = scmp.ne.s32.totalorder %s98, %s99
      %p110 = scmp.eq.s32.totalorder %s22, 0
      %p111 = por %p109, %p110
      %p112 = scmp.ne.s32.totalorder %s98, %s99
      %p113 = scmp.eq.s32.totalorder %s23, 1
      %p114 = por %p112, %p113
      %p116 = scmp.ne.s32.totalorder %s99, %s115
      %p117 = scmp.eq.s32.totalorder %s23, 0
      %p118 = por %p116, %p117
      %p119 = scmp.le.s32.totalorder 1, %s17
      %p120 = scmp.lt.s32.totalorder %s17, 3
      %p121 = pnand %p119, %p120
      %p122 = pneg %p121
      // Predicated region
      $region9: #{tpu_custom_call.1} parent=5 // pred_check
        _
      $region10: #{tpu_custom_call.1} parent=5 // pred_check_branch
        %124 = sbr.rel (%p121) target = $region12
      $region11: #{tpu_custom_call.1} parent=5 // pred_region
        %s125 = ssub.s32 %s17, 1
        // Predicated region
        $region13: #{tpu_custom_call.1} parent=11 // pred_check
          %p126 = pneg %p38
        $region14: #{tpu_custom_call.1} parent=11 // pred_check_branch
          %128 = sbr.rel (%p126) target = $region16
        $region15: #{tpu_custom_call.1} parent=11 // pred_region
          %130 = vsyncadd [#allocation5], 0
          %s132 = sshll.u32 %s0, 4
          %s133 = int_to_ptr.hbm [resolvable:$true] %s132
          %135 = dma.hbm_to_smem %s133, 16, [#allocation2], [#allocation5]
        $region16: #{tpu_custom_call.1} parent=11 // pred_fallthru
          _
        // Predicated region
        $region17: #{tpu_custom_call.1} parent=11 // pred_check
          %p136 = pneg %p59
        $region18: #{tpu_custom_call.1} parent=11 // pred_check_branch
          %138 = sbr.rel (%p136) target = $region20
        $region19: #{tpu_custom_call.1} parent=11 // pred_region
          %140 = vsyncadd [#allocation3], 0
          %s142 = sshll.u32 %s1, 4
          %s143 = int_to_ptr.hbm [resolvable:$true] %s142
          %s144 = sshll.u32 [#allocation6], 4
          %s145 = int_to_ptr.vmem [resolvable:$true] %s144
          %147 = dma.hbm_to_vmem [thread:$0]  %s143, 128, %s145, [#allocation3]
        $region20: #{tpu_custom_call.1} parent=11 // pred_fallthru
          _
      $region12: #{tpu_custom_call.1} parent=5 // pred_fallthru
        _
      %p148 = scmp.lt.s32.totalorder %s17, 2
      // Predicated region
      $region21: #{tpu_custom_call.1} parent=5 // pred_check
        %p149 = pneg %p148
      $region22: #{tpu_custom_call.1} parent=5 // pred_check_branch
        %151 = sbr.rel (%p149) target = $region24
      $region23: #{tpu_custom_call.1} parent=5 // pred_region
        // Predicated region
        $region25: #{tpu_custom_call.1} parent=23 // pred_check
          %p152 = pneg %p79
        $region26: #{tpu_custom_call.1} parent=23 // pred_check_branch
          %154 = sbr.rel (%p152) target = $region28
        $region27: #{tpu_custom_call.1} parent=23 // pred_region
          %s155 = sand.u32 %s69, 1
          %s156 = scalar_lea.sflag [#allocation8], %s155
          %s157 = sand.u32 %s69, 1
          %s158 = smul.addr %s157, 8
          %s159 = scalar_lea.vmem [#allocation7], %s158
          %161 = vsyncadd %s156, 0
          %s162 = smul.addr %s17, 2
          %s163 = smul.addr %s162, 4
          %s164 = scalar_lea.hbm %s2, %s163
          %s166 = sshll.u32 %s164, 4
          %s167 = int_to_ptr.hbm [resolvable:$true] %s166
          %s168 = sshll.u32 %s159, 4
          %s169 = int_to_ptr.vmem [resolvable:$true] %s168
          %171 = dma.hbm_to_vmem [thread:$0]  %s167, 128, %s169, %s156
        $region28: #{tpu_custom_call.1} parent=23 // pred_fallthru
          _
      $region24: #{tpu_custom_call.1} parent=5 // pred_fallthru
        _
      %p172 = scmp.le.s32.totalorder 1, %s17
      %p173 = scmp.lt.s32.totalorder %s17, 3
      %p174 = pnand %p172, %p173
      %p175 = pneg %p174
      // Predicated region
      $region29: #{tpu_custom_call.1} parent=5 // pred_check
        _
      $region30: #{tpu_custom_call.1} parent=5 // pred_check_branch
        %177 = sbr.rel (%p174) target = $region32
      $region31: #{tpu_custom_call.1} parent=5 // pred_region
        %s178 = ssub.s32 %s17, 1
        // Predicated region
        $region33: #{tpu_custom_call.1} parent=31 // pred_check
          %p179 = pneg %p38
        $region34: #{tpu_custom_call.1} parent=31 // pred_check_branch
          %181 = sbr.rel (%p179) target = $region36
        $region35: #{tpu_custom_call.1} parent=31 // pred_region
          %183 = dma.done [#allocation5], 16
        $region36: #{tpu_custom_call.1} parent=31 // pred_fallthru
          _
        // Predicated region
        $region37: #{tpu_custom_call.1} parent=31 // pred_check
          %p184 = pneg %p59
        $region38: #{tpu_custom_call.1} parent=31 // pred_check_branch
          %186 = sbr.rel (%p184) target = $region40
        $region39: #{tpu_custom_call.1} parent=31 // pred_region
          %188 = dma.done [#allocation3], 128
        $region40: #{tpu_custom_call.1} parent=31 // pred_fallthru
          _
        %s189 = sand.u32 %s72, 1
        %s190 = scalar_lea.sflag [#allocation8], %s189
        %s191 = sand.u32 %s72, 1
        %s192 = smul.addr %s191, 8
        %s193 = scalar_lea.vmem [#allocation7], %s192
        // Predicated region
        $region41: #{tpu_custom_call.1} parent=31 // pred_check
          %p194 = pneg %p85
        $region42: #{tpu_custom_call.1} parent=31 // pred_check_branch
          %196 = sbr.rel (%p194) target = $region44
        $region43: #{tpu_custom_call.1} parent=31 // pred_region
          %198 = dma.done %s190, 128
        $region44: #{tpu_custom_call.1} parent=31 // pred_fallthru
          _
        %199 = sfence
        %p200 = pneg %p38
        %p201 = pneg %p35
        %p202 = pneg %p59
        %p203 = pneg %p56
        %s204 = sand.u32 %s72, 1
        %s205 = scalar_lea.sflag [#allocation8], %s204
        %s206 = sand.u32 %s72, 1
        %s207 = smul.addr %s206, 8
        %s208 = scalar_lea.vmem [#allocation7], %s207
        %p209 = pneg %p85
        %p210 = pneg %p82
        %p211 = pneg %p111
        %p212 = pneg %p108
        %s213 = sand.u32 %s98, 1
        %s214 = scalar_lea.sflag [#allocation4], %s213
        %s215 = sand.u32 %s98, 1
        %s216 = smul.addr %s215, 8
        %s217 = scalar_lea.vmem [#allocation9], %s216
        %v218 = vld [vmem:[%s193] ss:$4 sm:$0x3]
        %s219 = scalar_lea.vmem %s193, 1 [#allocation7]
        %v220 = vld [vmem:[%s219] ss:$4 sm:$0x3]
        %v221 = vadd.f32 %v218, %v220
        %s222 = scalar_lea.vmem %s193, 2 [#allocation7]
        %v223 = vld [vmem:[%s222] ss:$4 sm:$0x3]
        %v224 = vadd.f32 %v221, %v223
        %s225 = scalar_lea.vmem %s193, 3 [#allocation7]
        %v226 = vld [vmem:[%s225] ss:$4 sm:$0x3]
        %v227 = vadd.f32 %v224, %v226
        %v228 = vmul.f32 %v227, 0.25
        %v229 = vld [vmem:[#allocation6] ss:$4 sm:$0x3]
        %vm230 = vcmp.eq.f32.partialorder %v229, 1.0
        %s231 = scalar_lea.vmem [#allocation6], 1
        %v232 = vld [vmem:[%s231] ss:$4 sm:$0x3]
        %vm233 = vcmp.eq.f32.partialorder %v232, 1.0
        %s234 = scalar_lea.vmem [#allocation6], 2
        %v235 = vld [vmem:[%s234] ss:$4 sm:$0x3]
        %vm236 = vcmp.eq.f32.partialorder %v235, 1.0
        %s237 = scalar_lea.vmem [#allocation6], 3
        %v238 = vld [vmem:[%s237] ss:$4 sm:$0x3]
        %vm239 = vcmp.eq.f32.partialorder %v238, 1.0
        %v241 = vperm.slane %v228, 0
        %v242 = vperm.slane %v228, 1
        %245 = vrot.lane.b32.xlu0 %v241, 1
        %v246 = vpop.permute.xlu0 %245
        %247 = vrot.lane.b32.xlu0 %v242, 1
        %v248 = vpop.permute.xlu0 %247
        %v249 = vlaneseq
        %v250 = vand.u32 %v249, 127
        %vm251 = vcmp.lt.s32.totalorder %v250, 1
        %v252 = vsel %vm251, %v246, %v248
        %v253 = vsel %vm251, %v248, %v246
        %v256 = vrot.slane %v252, 7
        %vm257 = vcmask 1040384
        %v258 = vsel %vm257, %v253, %v256
        %v260 = vsel %vm230, %v258, 0.0
        %261 = vrot.lane.b32.xlu0 %v241, 127
        %v262 = vpop.permute.xlu0 %261
        %263 = vrot.lane.b32.xlu0 %v242, 127
        %v264 = vpop.permute.xlu0 %263
        %vm265 = vcmp.lt.s32.totalorder %v250, 127
        %v266 = vsel %vm265, %v262, %v264
        %v267 = vsel %vm265, %v264, %v262
        %v270 = vrot.slane %v267, 7
        %v271 = vsel %vm257, %v266, %v270
        %v273 = vsel %vm233, %v271, 0.0
        %s274 = sld [smem:[#allocation2]]
        %v275 = vstv %s274
        %v276 = vmul.f32 %v275, %v260
        %s277 = sld [smem:[#allocation2 + $0x1]]
        %v278 = vstv %s277
        %v279 = vmul.f32 %v278, %v228
        %v280 = vadd.f32 %v276, %v279
        %s281 = sld [smem:[#allocation2 + $0x2]]
        %v282 = vstv %s281
        %v283 = vmul.f32 %v282, %v273
        %v284 = vadd.f32 %v280, %v283
        %v286 = vperm.slane %v284, 0
        %v287 = vperm.slane %v284, 1
        %290 = vrot.lane.b32.xlu0 %v286, 16
        %v291 = vpop.permute.xlu0 %290
        %292 = vrot.lane.b32.xlu0 %v287, 16
        %v293 = vpop.permute.xlu0 %292
        %vm294 = vcmp.lt.s32.totalorder %v250, 16
        %v295 = vsel %vm294, %v291, %v293
        %v296 = vsel %vm294, %v293, %v291
        %v299 = vrot.slane %v295, 7
        %v300 = vsel %vm257, %v296, %v299
        %v302 = vsel %vm236, %v300, 0.0
        %v303 = vadd.f32 %v302, 0.0
        %s304 = sld [smem:[#allocation2 + $0x3]]
        %v305 = vstv %s304
        %v306 = vmul.f32 %v305, %v260
        %s307 = sld [smem:[#allocation2 + $0x4]]
        %v308 = vstv %s307
        %v309 = vmul.f32 %v308, %v228
        %v310 = vadd.f32 %v306, %v309
        %s311 = sld [smem:[#allocation2 + $0x5]]
        %v312 = vstv %s311
        %v313 = vmul.f32 %v312, %v273
        %v314 = vadd.f32 %v310, %v313
        %v315 = vadd.f32 %v303, %v314
        %s316 = sld [smem:[#allocation2 + $0x6]]
        %v317 = vstv %s316
        %v318 = vmul.f32 %v317, %v260
        %s319 = sld [smem:[#allocation2 + $0x7]]
        %v320 = vstv %s319
        %v321 = vmul.f32 %v320, %v228
        %v322 = vadd.f32 %v318, %v321
        %s323 = sld [smem:[#allocation2 + $0x8]]
        %v324 = vstv %s323
        %v325 = vmul.f32 %v324, %v273
        %v326 = vadd.f32 %v322, %v325
        %v328 = vperm.slane %v326, 0
        %v329 = vperm.slane %v326, 1
        %332 = vrot.lane.b32.xlu0 %v328, 112
        %v333 = vpop.permute.xlu0 %332
        %334 = vrot.lane.b32.xlu0 %v329, 112
        %v335 = vpop.permute.xlu0 %334
        %vm336 = vcmp.lt.s32.totalorder %v250, 112
        %v337 = vsel %vm336, %v333, %v335
        %v338 = vsel %vm336, %v335, %v333
        %v341 = vrot.slane %v338, 7
        %v342 = vsel %vm257, %v337, %v341
        %v344 = vsel %vm239, %v342, 0.0
        %v345 = vadd.f32 %v315, %v344
        %s346 = sld [smem:[#allocation2 + $0x9]]
        %v347 = vstv %s346
        %v348 = vadd.f32 %v345, %v347
        %vm349 = vcmp.gt.f32.partialorder %v348, 0.0
        %v350 = vmin.f32 %v348, 0.0
        %v351 = vmul.f32 %v350, 1.442695
        %v352 = vpow.pop %v351
        %v353 = vsub.f32 %v352, 1.0
        %v354 = vsel %vm349, %v348, %v353
        %v355 = vsub.f32 0.0, %v354
        %v356 = vmul.f32 %v355, 1.442695
        %v357 = vpow.pop %v356
        %v358 = vadd.f32 %v357, 1.0
        %v359 = vrcp.pop %v358
        %v360 = vmul.f32 %v358, %v359
        %v361 = vsub.f32 1.0, %v360
        %v362 = vmul.f32 %v359, %v361
        %v363 = vadd.f32 %v359, %v362
        %vm364 = vweird.f32 %v358
        %vm365 = vweird.f32 %v359
        %vm366 = vmor %vm364, %vm365
        %v367 = vsel %vm366, %v359, %v363
        %v368 = vand.u32 2147483647, %v358
        %vm369 = vcmp.eq.f32.partialorder %v368, 8.507059e+37
        %v370 = vand.u32 %v358, 2147483648
        %v371 = vor.u32 1.1754944e-38, %v370
        %v372 = vsel %vm369, %v371, %v367
        %v373 = vsel %vm257, %v241, 0.0
        %v374 = vsel %vm257, %v242, 0.0
        %v375 = vadd.f32 %v373, %v374
        %376 = vadd.xlane.f32.xlu0 %v375
        %v377 = vpop.xlane.xlu0 %376
        %v378 = vrcp.pop 256.0
        %v379 = vmul.f32 256.0, %v378
        %v380 = vsub.f32 1.0, %v379
        %v381 = vmul.f32 %v378, %v380
        %v382 = vadd.f32 %v378, %v381
        %vm383 = vweird.f32 %v378
        %v384 = vsel %vm383, %v378, %v382
        %v385 = vmul.f32 %v377, %v384
        %s386 = sld [smem:[#allocation2 + $0xa]]
        %v387 = vstv %s386
        %v388 = vmul.f32 %v385, %v387
        %s389 = sld [smem:[#allocation2 + $0xb]]
        %v390 = vstv %s389
        %v391 = vadd.f32 %v388, %v390
        %vm392 = vcmp.gt.f32.partialorder %v391, 0.0
        %v393 = vmin.f32 %v391, 0.0
        %v394 = vmul.f32 %v393, 1.442695
        %v395 = vpow.pop %v394
        %v396 = vsub.f32 %v395, 1.0
        %v397 = vsel %vm392, %v391, %v396
        %v398 = vsub.f32 0.0, %v397
        %v399 = vmul.f32 %v398, 1.442695
        %v400 = vpow.pop %v399
        %v401 = vadd.f32 %v400, 1.0
        %v402 = vrcp.pop %v401
        %v403 = vmul.f32 %v401, %v402
        %v404 = vsub.f32 1.0, %v403
        %v405 = vmul.f32 %v402, %v404
        %v406 = vadd.f32 %v402, %v405
        %vm407 = vweird.f32 %v401
        %vm408 = vweird.f32 %v402
        %vm409 = vmor %vm407, %vm408
        %v410 = vsel %vm409, %v402, %v406
        %v411 = vand.u32 2147483647, %v401
        %vm412 = vcmp.eq.f32.partialorder %v411, 8.507059e+37
        %v413 = vand.u32 %v401, 2147483648
        %v414 = vor.u32 1.1754944e-38, %v413
        %v415 = vsel %vm412, %v414, %v410
        %v417 = vperm.slane %v415, 0
        %v419 = vmul.f32 %v372, %v417
        %v420 = vmul.f32 %v218, %v419
        %v421 = vlaneseq
        %vm422 = vcmp.ge.s32.totalorder %v421, 0
        %vm423 = vcmp.lt.s32.totalorder %v421, 256
        %vm424 = vmand %vm422, %vm423
        %425 = vst.msk [vmem:[%s217] ss:$4 sm:$0x3] %vm424, %v420
        %v426 = vld [vmem:[%s219] ss:$4 sm:$0x3]
        %v427 = vmul.f32 %v426, %v419
        %s428 = scalar_lea.vmem %s217, 1 [#allocation9]
        %429 = vst.msk [vmem:[%s428] ss:$4 sm:$0x3] %vm424, %v427
        %v430 = vld [vmem:[%s222] ss:$4 sm:$0x3]
        %v431 = vmul.f32 %v430, %v419
        %s432 = scalar_lea.vmem %s217, 2 [#allocation9]
        %433 = vst.msk [vmem:[%s432] ss:$4 sm:$0x3] %vm424, %v431
        %v434 = vld [vmem:[%s225] ss:$4 sm:$0x3]
        %v435 = vmul.f32 %v434, %v419
        %s436 = scalar_lea.vmem %s217, 3 [#allocation9]
        %437 = vst.msk [vmem:[%s436] ss:$4 sm:$0x3] %vm424, %v435
        %s438 = sand.u32 %s98, 1
        %s439 = scalar_lea.sflag [#allocation4], %s438
        %s440 = sand.u32 %s98, 1
        %s441 = smul.addr %s440, 8
        %s442 = scalar_lea.vmem [#allocation9], %s441
        // Predicated region
        $region45: #{tpu_custom_call.1} parent=31 // pred_check
          %p443 = pneg %p108
        $region46: #{tpu_custom_call.1} parent=31 // pred_check_branch
          %445 = sbr.rel (%p443) target = $region48
        $region47: #{tpu_custom_call.1} parent=31 // pred_region
          %447 = vsyncadd %s439, 0
          %s448 = smul.addr %s22, 2
          %s449 = smul.addr %s448, 4
          %s450 = scalar_lea.hbm %s3, %s449
          %s452 = sshll.u32 %s442, 4
          %s453 = int_to_ptr.vmem [resolvable:$true] %s452
          %s454 = sshll.u32 %s450, 4
          %s455 = int_to_ptr.hbm [resolvable:$true] %s454
          %457 = dma.vmem_to_hbm [thread:$0]  %s453, 128, %s455, %s439
        $region48: #{tpu_custom_call.1} parent=31 // pred_fallthru
          _
      $region32: #{tpu_custom_call.1} parent=5 // pred_fallthru
        _
      %p458 = scmp.le.s32.totalorder 2, %s17
      // Predicated region
      $region49: #{tpu_custom_call.1} parent=5 // pred_check
        %p459 = pneg %p458
      $region50: #{tpu_custom_call.1} parent=5 // pred_check_branch
        %461 = sbr.rel (%p459) target = $region52
      $region51: #{tpu_custom_call.1} parent=5 // pred_region
        %s462 = ssub.s32 %s17, 2
        // Predicated region
        $region53: #{tpu_custom_call.1} parent=51 // pred_check
          %p463 = pneg %p114
        $region54: #{tpu_custom_call.1} parent=51 // pred_check_branch
          %465 = sbr.rel (%p463) target = $region56
        $region55: #{tpu_custom_call.1} parent=51 // pred_region
          %s466 = sand.u32 %s99, 1
          %s467 = scalar_lea.sflag [#allocation4], %s466
          %s468 = sand.u32 %s99, 1
          %s469 = smul.addr %s468, 8
          %s470 = scalar_lea.vmem [#allocation9], %s469
          %472 = dma.done %s467, 128
        $region56: #{tpu_custom_call.1} parent=51 // pred_fallthru
          _
      $region52: #{tpu_custom_call.1} parent=5 // pred_fallthru
        _
    $region6: #{tpu_custom_call.1} parent=1 // loop_footer
      %s21 = sadd.s32 1, %s17
    $region7: #{tpu_custom_call.1} parent=1 // loop_footer_branch
      %16 = sbr.rel target = $region3
    $region8: #{tpu_custom_call.1} parent=1 // loop_exit
      _
    %473 = vsyncpa [#allocation3], 1
    %s474 = scalar_lea.sflag [#allocation3], 1
    %475 = vsyncpa %s474, 1
    %476 = vsyncpa [#allocation8], 1
    %s477 = scalar_lea.sflag [#allocation8], 1
    %478 = vsyncpa %s477, 1
    %479 = vsyncpa [#allocation4], 1
    %s480 = scalar_lea.sflag [#allocation4], 1
    %481 = vsyncpa %s480, 1
    %482 = vsyncpa [#allocation5], 1
    %s483 = scalar_lea.sflag [#allocation5], 1
    %484 = vsyncpa %s483, 1

</llo_original>
